<compile_context>
chip_gen: v7x
topology: tpu7x:2x2x1
jax: 0.10.0
libtpu: 0.0.40
codegen_flags: <defaults>
</compile_context>

<pallas_src>
import functools

import jax
import jax.numpy as jnp
from jax.experimental import pallas as pl
from jax.experimental.pallas import tpu as pltpu

BN_EPS = 1e-5
LANE = 128
SUBLANE = 8
MAX_TILE = 1024              # safe default on v5e/v6e/v7x; 2048 possible on v6e/v7x
H_RESIDENT_BYTES = 6 << 20   # keep h VMEM-resident if its bf16 slab is <= 6 MiB


def _round_up(a, b):
    return (a + b - 1) // b * b


def _pick_tile(n, align, max_tile, prefer_multi=False):
    """Largest tile (multiple of `align`, <= max_tile) with <=~10% padding overshoot.

    If prefer_multi, additionally prefer tiles giving >= 2 grid steps (megacore).
    """
    base = _round_up(n, align)
    slack = base // 10
    cands = [t for t in (2048, 1024, 512, 256, 128, 64, 32, 16, 8)
             if align <= t <= max_tile]
    for want_multi in ((True, False) if prefer_multi else (False,)):
        for t in cands:
            padded = _round_up(n, t)
            if padded > base + slack:
                continue
            if want_multi and padded // t < 2:
                continue
            return t, padded
    return align, base


def _matmul_stats_kernel(adj_ref, h_ref, y_ref, psum_ref, psq_ref, *,
                         tm, tk, dh_pad, h_resident):
    """Row-tile of A @ h (f32 accumulation into y_ref) + per-tile BN statistics."""
    k = pl.program_id(1)

    @pl.when(k == 0)
    def _():
        y_ref[...] = jnp.zeros_like(y_ref)

    # Per-tile f32 -> bf16 cast of A (VPU; hidden under the A DMA). bf16 x bf16 -> f32
    # accumulation on the MXU directly into the resident output block.
    a = adj_ref[...].astype(jnp.bfloat16)
    if h_resident:
        hk = h_ref[pl.ds(pl.multiple_of(k * tk, tk), tk), :]
    else:
        hk = h_ref[...]
    y_ref[...] += jnp.dot(a, hk, preferred_element_type=jnp.float32)

    @pl.when(k == pl.num_programs(1) - 1)
    def _():
        # Chunked partial BN statistics: running (8, dh_pad) slabs keep vreg pressure
        # constant regardless of tm. Padded rows of A (and h) are exactly zero, so
        # padded rows of y are exactly zero and need no masking; the wrapper divides
        # by the real node count.
        nz = tm // SUBLANE

        def body(c, carry):
            s, q = carry
            rows = y_ref[pl.ds(pl.multiple_of(c * SUBLANE, SUBLANE), SUBLANE), :]
            return s + rows, q + rows * rows

        zero = jnp.zeros((SUBLANE, dh_pad), jnp.float32)
        psum, psq = jax.lax.fori_loop(0, nz, body, (zero, zero),
                                      unroll=min(8, nz))
        psum_ref[...] = psum
        psq_ref[...] = psq


def _bn_relu_kernel(y_ref, scale_ref, shift_ref, o_ref):
    # BatchNorm folded to y*scale + shift, then ReLU (writes in place over y slab).
    o_ref[...] = jnp.maximum(y_ref[...] * scale_ref[...] + shift_ref[...], 0.0)


def custom_gcn_layer(x, edge_index, edge_attr, batch, params):
    """Forward pass equivalent to CustomGCNLayer.forward.

    x:          (N, input_dim) float32 node features
    edge_index: (2, E) int32, row 0 = src, row 1 = dst
    edge_attr:  (E,)  float32 edge weights
    batch:      (N,)  int32 graph assignment (passed through)
    """
    n = x.shape[0]
    hidden = params["w"].shape[1]
    dh_pad = _round_up(hidden, LANE)

    tm, n_pad_m = _pick_tile(n, SUBLANE, MAX_TILE, prefer_multi=True)
    tk, n_pad_k = _pick_tile(n, LANE, MAX_TILE)
    gm, gk = n_pad_m // tm, n_pad_k // tk

    h_bytes = n_pad_k * dh_pad * 2
    h_resident = h_bytes <= H_RESIDENT_BYTES

    # ---- Wrapper glue (O(E) + O(N*Dh), cheap vs the O(N^2*Dh) kernel) ----------
    # Dense adjacency A[dst, src] (message-passing sum aggregation). Scatter-add
    # stays f32 (exact duplicate-edge accumulation); bf16 cast happens per tile
    # inside the kernel.
    # TODO(synk): block-CSR + PrefetchScalarGridSpec gather for large sparse graphs.
    src, dst = edge_index[0], edge_index[1]
    adj = jnp.zeros((n_pad_m, n_pad_k), jnp.float32).at[dst, src].add(
        edge_attr.astype(jnp.float32))

    # Hoisted linear transform: h = X @ W (Din tiny -> done once, f32).
    h = x.astype(jnp.float32) @ params["w"].astype(jnp.float32)
    h = jnp.pad(h, ((0, n_pad_k - n), (0, dh_pad - hidden))).astype(jnp.bfloat16)

    gamma = jnp.pad(params["gamma"], (0, dh_pad - hidden))
    beta = jnp.pad(params["beta"], (0, dh_pad - hidden))
    # NOTE: params["b"] (GCNConv bias) is intentionally unused: it cancels exactly
    # under BatchNorm (mean shift), so it is folded away.

    h_spec = (pl.BlockSpec((n_pad_k, dh_pad), lambda i, k: (0, 0)) if h_resident
              else pl.BlockSpec((tk, dh_pad), lambda i, k: (k, 0)))

    # Explicit VMEM budget (double-buffered A / h / y tiles + stats), with headroom.
    h_vmem = (n_pad_k if h_resident else tk) * dh_pad * 2
    needed = (2 * tm * tk * 4          # A tiles (f32)
              + 2 * h_vmem             # h (conservatively assume double-buffered)
              + 2 * tm * dh_pad * 4    # y accumulator tiles (f32)
              + 4 * SUBLANE * dh_pad * 4)
    vmem_limit = int(min(max(2 * needed, 32 << 20), 56 << 20))

    kernel1 = functools.partial(_matmul_stats_kernel, tm=tm, tk=tk,
                                dh_pad=dh_pad, h_resident=h_resident)
    cost1 = pl.CostEstimate(
        flops=2 * n_pad_m * n_pad_k * dh_pad,
        transcendentals=0,
        bytes_accessed=(4 * n_pad_m * n_pad_k                       # A (f32) streamed
                        + (1 if h_resident else gm) * 2 * n_pad_k * dh_pad
                        + 4 * n_pad_m * dh_pad                      # y (f32) written
                        + 2 * 4 * gm * SUBLANE * dh_pad))           # partial stats

    y, psum, psq = pl.pallas_call(
        kernel1,
        out_shape=(
            jax.ShapeDtypeStruct((n_pad_m, dh_pad), jnp.float32),
            jax.ShapeDtypeStruct((gm * SUBLANE, dh_pad), jnp.float32),
            jax.ShapeDtypeStruct((gm * SUBLANE, dh_pad), jnp.float32),
        ),
        grid_spec=pltpu.PrefetchScalarGridSpec(
            num_scalar_prefetch=0,
            grid=(gm, gk),
            in_specs=[
                pl.BlockSpec((tm, tk), lambda i, k: (i, k)),   # A tile (f32)
                h_spec,                                        # h (resident or tiled)
            ],
            out_specs=(
                pl.BlockSpec((tm, dh_pad), lambda i, k: (i, 0)),       # y accumulator
                pl.BlockSpec((SUBLANE, dh_pad), lambda i, k: (i, 0)),  # partial sum
                pl.BlockSpec((SUBLANE, dh_pad), lambda i, k: (i, 0)),  # partial sumsq
            ),
        ),
        compiler_params=pltpu.CompilerParams(
            dimension_semantics=("parallel", "arbitrary"),
            vmem_limit_bytes=vmem_limit),
        cost_estimate=cost1,
    )(adj, h)

    # ---- Global BN statistics (tiny reduction) + fold into scale/shift ---------
    total = jnp.sum(psum, axis=0)
    total_sq = jnp.sum(psq, axis=0)
    mean = total / n
    var = jnp.maximum(total_sq / n - mean * mean, 0.0)   # biased variance, clamped
    inv_std = jax.lax.rsqrt(var + BN_EPS)
    scale = (gamma * inv_std).reshape(1, dh_pad)
    shift = (beta - mean * gamma * inv_std).reshape(1, dh_pad)

    # ---- Phase 2: normalize + ReLU, in place over the y slab --------------------
    tm2, gm2 = tm, gm
    for f in (16, 8, 4, 2):
        if tm * f <= 2048 and gm % f == 0 and gm // f >= 2:
            tm2, gm2 = tm * f, gm // f
            break

    out = pl.pallas_call(
        _bn_relu_kernel,
        out_shape=jax.ShapeDtypeStruct((n_pad_m, dh_pad), jnp.float32),
        grid_spec=pltpu.PrefetchScalarGridSpec(
            num_scalar_prefetch=0,
            grid=(gm2,),
            in_specs=[
                pl.BlockSpec((tm2, dh_pad), lambda i: (i, 0)),
                pl.BlockSpec((1, dh_pad), lambda i: (0, 0)),
                pl.BlockSpec((1, dh_pad), lambda i: (0, 0)),
            ],
            out_specs=pl.BlockSpec((tm2, dh_pad), lambda i: (i, 0)),
        ),
        compiler_params=pltpu.CompilerParams(dimension_semantics=("parallel",)),
        input_output_aliases={0: 0},
    )(y, scale, shift)

    return out[:n, :hidden], edge_index, edge_attr, batch


def init_params(key, input_dim, hidden_dim):
    kw, kb = jax.random.split(key)
    w = jax.random.normal(kw, (input_dim, hidden_dim), jnp.float32) * (
        1.0 / jnp.sqrt(jnp.float32(input_dim))
    )
    b = jax.random.uniform(kb, (hidden_dim,), jnp.float32, -0.1, 0.1)
    gamma = jnp.ones((hidden_dim,), jnp.float32)   # BatchNorm1d weight init
    beta = jnp.zeros((hidden_dim,), jnp.float32)   # BatchNorm1d bias init
    return {"w": w, "b": b, "gamma": gamma, "beta": beta}


if __name__ == "__main__":
    input_dim = 4
    hidden_dim = 32
    num_nodes = 8
    num_edges = 16

    key = jax.random.PRNGKey(0)
    kx, ke, kw_attr, kparams = jax.random.split(key, 4)

    x = jax.random.normal(kx, (num_nodes, input_dim), jnp.float32)
    edge_index = jax.random.randint(ke, (2, num_edges), 0, num_nodes, jnp.int32)
    edge_attr = jax.random.uniform(kw_attr, (num_edges,), jnp.float32, 0.1, 1.0)
    batch = jnp.zeros((num_nodes,), jnp.int32)  # single graph

    params = init_params(kparams, input_dim, hidden_dim)

    fwd = jax.jit(custom_gcn_layer)
    out, ei, ea, b = fwd(x, edge_index, edge_attr, batch, params)
    jax.block_until_ready(out)

    # Pure-JAX reference with the same bf16 rounding on the matmul operands
    # (accumulation / BN stats stay f32, matching the kernel). The GCN bias is kept
    # here; it cancels exactly under BatchNorm, matching the kernel's bias fold.
    adj_ref = jnp.zeros((num_nodes, num_nodes), jnp.float32).at[
        edge_index[1], edge_index[0]
    ].add(edge_attr)
    h_ref = x @ params["w"]
    adj_q = adj_ref.astype(jnp.bfloat16).astype(jnp.float32)
    h_q = h_ref.astype(jnp.bfloat16).astype(jnp.float32)
    y_ref = adj_q @ h_q + params["b"]
    mean = y_ref.mean(0, keepdims=True)
    var = ((y_ref - mean) ** 2).mean(0, keepdims=True)
    y_ref = (y_ref - mean) / jnp.sqrt(var + BN_EPS)
    y_ref = jnp.maximum(y_ref * params["gamma"] + params["beta"], 0.0)
    assert out.shape == (num_nodes, hidden_dim)
    assert jnp.allclose(out, y_ref, atol=2e-3, rtol=2e-3), "mismatch vs reference"

    print("KERNEL_OK")
</pallas_src>

<mosaic_0001>
module attributes {stable_mosaic.version = 11 : i64} {
  func.func private @main(%arg0: i32) attributes {dimension_semantics = [#tpu.dimension_semantics<core_parallel>], iteration_bounds = array<i64: 2>, tpu.core_type = #tpu.core_type<sc_scalar_subcore>, window_params = []} {
    return
  }
}

module attributes {stable_mosaic.version = 11 : i64} {
  func.func private @main(%arg0: i32) attributes {dimension_semantics = [#tpu.dimension_semantics<core_parallel>], iteration_bounds = array<i64: 2>, tpu.core_type = #tpu.core_type<sc_scalar_subcore>, window_params = []} {
    return
  }
}

module attributes {stable_mosaic.version = 11 : i64} {
  func.func @_matmul_stats_kernel(%arg0: i32, %arg1: i32, %arg2: memref<8x128xf32, #tpu.memory_space<vmem>>, %arg3: memref<128x128xbf16, #tpu.memory_space<vmem>>, %arg4: memref<8x128xf32, #tpu.memory_space<vmem>>, %arg5: memref<8x128xf32, #tpu.memory_space<vmem>>, %arg6: memref<8x128xf32, #tpu.memory_space<vmem>>) attributes {dimension_semantics = [#tpu.dimension_semantics<parallel>, #tpu.dimension_semantics<arbitrary>], iteration_bounds = array<i64: 1, 1>, scalar_prefetch = 0 : i64, scratch_operands = 0 : i64, tpu.core_type = #tpu.core_type<tc>, window_params = [{transform_indices = @transform_0, window_bounds = array<i64: 8, 128>}, {pipeline_mode = #tpu.pipeline_mode<synchronous>, transform_indices = @transform_1, window_bounds = array<i64: 128, 128>}, {transform_indices = @transform_2, window_bounds = array<i64: 8, 128>}, {transform_indices = @transform_3, window_bounds = array<i64: 8, 128>}, {transform_indices = @transform_4, window_bounds = array<i64: 8, 128>}]} {
    %c0_i32 = arith.constant 0 : i32
    %0 = arith.cmpi eq, %arg1, %c0_i32 : i32
    %1 = arith.extui %0 : i1 to i32
    %c0_i32_0 = arith.constant 0 : i32
    %2 = arith.cmpi ne, %1, %c0_i32_0 : i32
    scf.if %2 {
      %cst_9 = arith.constant 0.000000e+00 : f32
      %16 = vector.broadcast %cst_9 : f32 to vector<8x128xf32>
      %c0_10 = arith.constant 0 : index
      %c0_11 = arith.constant 0 : index
      %17 = vector.load %arg4[%c0_10, %c0_11] : memref<8x128xf32, #tpu.memory_space<vmem>>, vector<8x128xf32>
      tpu.vector_store %arg4[%c0_10, %c0_11], %16 {strides = array<i32>} : memref<8x128xf32, #tpu.memory_space<vmem>>, vector<8x128xf32>,
    } else {
    }
    %c0 = arith.constant 0 : index
    %c0_1 = arith.constant 0 : index
    %3 = vector.load %arg2[%c0, %c0_1] : memref<8x128xf32, #tpu.memory_space<vmem>>, vector<8x128xf32>
    %4 = arith.truncf %3 : vector<8x128xf32> to vector<8x128xbf16>
    %c128_i32 = arith.constant 128 : i32
    %5 = arith.muli %arg1, %c128_i32 : i32
    %6 = tpu.assume_multiple %5, 128 : i32
    %7 = arith.index_cast %6 : i32 to index
    %c0_2 = arith.constant 0 : index
    %8 = vector.load %arg3[%7, %c0_2] : memref<128x128xbf16, #tpu.memory_space<vmem>>, vector<128x128xbf16>
    %c0_3 = arith.constant 0 : index
    %c0_4 = arith.constant 0 : index
    %9 = vector.load %arg4[%c0_3, %c0_4] : memref<8x128xf32, #tpu.memory_space<vmem>>, vector<8x128xf32>
    %cst = arith.constant dense<0.000000e+00> : vector<8x128xf32>
    %10 = tpu.matmul %4, %8, %cst {dimension_numbers = #tpu.dot_dimension_numbers<[1], [0], [0], [1], [0, 0, 1, 1], [], []>} : vector<8x128xbf16>, vector<128x128xbf16>, vector<8x128xf32> -> vector<8x128xf32>
    %11 = arith.addf %9, %10 : vector<8x128xf32>
    %c0_5 = arith.constant 0 : index
    %c0_6 = arith.constant 0 : index
    %12 = vector.load %arg4[%c0_5, %c0_6] : memref<8x128xf32, #tpu.memory_space<vmem>>, vector<8x128xf32>
    tpu.vector_store %arg4[%c0_5, %c0_6], %11 {strides = array<i32>} : memref<8x128xf32, #tpu.memory_space<vmem>>, vector<8x128xf32>,
    %c0_i32_7 = arith.constant 0 : i32
    %13 = arith.cmpi eq, %arg1, %c0_i32_7 : i32
    %14 = arith.extui %13 : i1 to i32
    %c0_i32_8 = arith.constant 0 : i32
    %15 = arith.cmpi ne, %14, %c0_i32_8 : i32
    scf.if %15 {
      %cst_9 = arith.constant 0.000000e+00 : f32
      %16 = vector.broadcast %cst_9 : f32 to vector<8x128xf32>
      %c0_i32_10 = arith.constant 0 : i32
      %c8_i32 = arith.constant 8 : i32
      %17 = arith.muli %c0_i32_10, %c8_i32 : i32
      %18 = tpu.assume_multiple %17, 8 : i32
      %19 = arith.index_cast %18 : i32 to index
      %c0_11 = arith.constant 0 : index
      %20 = vector.load %arg4[%19, %c0_11] : memref<8x128xf32, #tpu.memory_space<vmem>>, vector<8x128xf32>
      %21 = arith.addf %16, %20 : vector<8x128xf32>
      %22 = arith.mulf %20, %20 : vector<8x128xf32>
      %23 = arith.addf %16, %22 : vector<8x128xf32>
      %c1_i32 = arith.constant 1 : i32
      %c0_12 = arith.constant 0 : index
      %c0_13 = arith.constant 0 : index
      %24 = vector.load %arg5[%c0_12, %c0_13] : memref<8x128xf32, #tpu.memory_space<vmem>>, vector<8x128xf32>
      tpu.vector_store %arg5[%c0_12, %c0_13], %21 {strides = array<i32>} : memref<8x128xf32, #tpu.memory_space<vmem>>, vector<8x128xf32>,
      %c0_14 = arith.constant 0 : index
      %c0_15 = arith.constant 0 : index
      %25 = vector.load %arg6[%c0_14, %c0_15] : memref<8x128xf32, #tpu.memory_space<vmem>>, vector<8x128xf32>
      tpu.vector_store %arg6[%c0_14, %c0_15], %23 {strides = array<i32>} : memref<8x128xf32, #tpu.memory_space<vmem>>, vector<8x128xf32>,
    } else {
    }
    return
  }
  func.func @transform_0(%arg0: i32, %arg1: i32) -> (i32, i32) {
    %c0_i32 = arith.constant 0 : i32
    return %arg0, %arg1 : i32, i32
  }
  func.func @transform_1(%arg0: i32, %arg1: i32) -> (i32, i32) {
    %c0_i32 = arith.constant 0 : i32
    %c0_i32_0 = arith.constant 0 : i32
    %c0_i32_1 = arith.constant 0 : i32
    return %c0_i32, %c0_i32_0 : i32, i32
  }
  func.func @transform_2(%arg0: i32, %arg1: i32) -> (i32, i32) {
    %c0_i32 = arith.constant 0 : i32
    %c0_i32_0 = arith.constant 0 : i32
    return %arg0, %c0_i32 : i32, i32
  }
  func.func @transform_3(%arg0: i32, %arg1: i32) -> (i32, i32) {
    %c0_i32 = arith.constant 0 : i32
    %c0_i32_0 = arith.constant 0 : i32
    return %arg0, %c0_i32 : i32, i32
  }
  func.func @transform_4(%arg0: i32, %arg1: i32) -> (i32, i32) {
    %c0_i32 = arith.constant 0 : i32
    %c0_i32_0 = arith.constant 0 : i32
    return %arg0, %c0_i32 : i32, i32
  }
}

module attributes {stable_mosaic.version = 11 : i64} {
  func.func @_bn_relu_kernel(%arg0: i32, %arg1: memref<8x128xf32, #tpu.memory_space<vmem>>, %arg2: memref<1x128xf32, #tpu.memory_space<vmem>>, %arg3: memref<1x128xf32, #tpu.memory_space<vmem>>, %arg4: memref<8x128xf32, #tpu.memory_space<vmem>>) attributes {dimension_semantics = [#tpu.dimension_semantics<parallel>], iteration_bounds = array<i64: 1>, scalar_prefetch = 0 : i64, scratch_operands = 0 : i64, tpu.core_type = #tpu.core_type<tc>, window_params = [{transform_indices = @transform_0, window_bounds = array<i64: 8, 128>}, {pipeline_mode = #tpu.pipeline_mode<synchronous>, transform_indices = @transform_1, window_bounds = array<i64: 1, 128>}, {pipeline_mode = #tpu.pipeline_mode<synchronous>, transform_indices = @transform_2, window_bounds = array<i64: 1, 128>}, {transform_indices = @transform_3, window_bounds = array<i64: 8, 128>}]} {
    %c0 = arith.constant 0 : index
    %c0_0 = arith.constant 0 : index
    %0 = vector.load %arg1[%c0, %c0_0] : memref<8x128xf32, #tpu.memory_space<vmem>>, vector<8x128xf32>
    %c0_1 = arith.constant 0 : index
    %c0_2 = arith.constant 0 : index
    %1 = vector.load %arg2[%c0_1, %c0_2] : memref<1x128xf32, #tpu.memory_space<vmem>>, vector<1x128xf32>
    %2 = vector.broadcast %1 : vector<1x128xf32> to vector<8x128xf32>
    %3 = arith.mulf %0, %2 : vector<8x128xf32>
    %c0_3 = arith.constant 0 : index
    %c0_4 = arith.constant 0 : index
    %4 = vector.load %arg3[%c0_3, %c0_4] : memref<1x128xf32, #tpu.memory_space<vmem>>, vector<1x128xf32>
    %5 = vector.broadcast %4 : vector<1x128xf32> to vector<8x128xf32>
    %6 = arith.addf %3, %5 : vector<8x128xf32>
    %cst = arith.constant 0.000000e+00 : f32
    %7 = vector.broadcast %cst : f32 to vector<8x128xf32>
    %8 = arith.maximumf %6, %7 : vector<8x128xf32>
    %c0_5 = arith.constant 0 : index
    %c0_6 = arith.constant 0 : index
    %9 = vector.load %arg4[%c0_5, %c0_6] : memref<8x128xf32, #tpu.memory_space<vmem>>, vector<8x128xf32>
    tpu.vector_store %arg4[%c0_5, %c0_6], %8 {strides = array<i32>} : memref<8x128xf32, #tpu.memory_space<vmem>>, vector<8x128xf32>,
    return
  }
  func.func @transform_0(%arg0: i32) -> (i32, i32) {
    %c0_i32 = arith.constant 0 : i32
    %c0_i32_0 = arith.constant 0 : i32
    return %arg0, %c0_i32 : i32, i32
  }
  func.func @transform_1(%arg0: i32) -> (i32, i32) {
    %c0_i32 = arith.constant 0 : i32
    %c0_i32_0 = arith.constant 0 : i32
    %c0_i32_1 = arith.constant 0 : i32
    return %c0_i32, %c0_i32_0 : i32, i32
  }
  func.func @transform_2(%arg0: i32) -> (i32, i32) {
    %c0_i32 = arith.constant 0 : i32
    %c0_i32_0 = arith.constant 0 : i32
    %c0_i32_1 = arith.constant 0 : i32
    return %c0_i32, %c0_i32_0 : i32, i32
  }
  func.func @transform_3(%arg0: i32) -> (i32, i32) {
    %c0_i32 = arith.constant 0 : i32
    %c0_i32_0 = arith.constant 0 : i32
    return %arg0, %c0_i32 : i32, i32
  }
}

</mosaic_0001>

<llo_original>
// kernel: custom_gcn_layer.3
$region0: #{custom_gcn_layer.3}
  #allocation0 [shape = 'u32[]', space=smem, size = 0x4, offset = 0x4, fixed_abs, tag = 'smem constant byte address 0x4 - core index']
  #allocation1 [shape = 'u32[144,128]{1,0:T(1,128)}', space=vmem, size = 0x12000, scoped, tag = 'internal scratch']
  %s0 = inlined_call_operand.vmem [shape: f32[8,128], index: 0, kind: input, shape index: {}, may-alias: {0,3}]
  %s1 = inlined_call_operand.vmem [shape: f32[1,128], index: 1, kind: input, shape index: {}]
  %s2 = inlined_call_operand.vmem [shape: f32[1,128], index: 2, kind: input, shape index: {}]
  %s3 = inlined_call_operand.vmem [shape: f32[8,128], index: 3, kind: output, shape index: {}, may-alias: {0,3}]
  %s4 = sld [smem:[#allocation0]]
  $region22: #{custom_gcn_layer.3} parent=0
    _
  %s6 = ssub.s32 1, %s4
  %s7 = scalar_select 0, %s6, %s4
  // Predicated region
  $region2: #{custom_gcn_layer.3} parent=0 // pred_check
    _
  $region3: #{custom_gcn_layer.3} parent=0 // pred_check_branch
    %9 = sbr.rel (0) target = $region5
  $region4: #{custom_gcn_layer.3} parent=0 // pred_region
    _
  $region5: #{custom_gcn_layer.3} parent=0 // pred_fallthru
    _
  // Predicated region
  $region6: #{custom_gcn_layer.3} parent=0 // pred_check
    _
  $region7: #{custom_gcn_layer.3} parent=0 // pred_check_branch
    %11 = sbr.rel (0) target = $region9
  $region8: #{custom_gcn_layer.3} parent=0 // pred_region
    _
  $region9: #{custom_gcn_layer.3} parent=0 // pred_fallthru
    _
  // Predicated region
  $region10: #{custom_gcn_layer.3} parent=0 // pred_check
    _
  $region11: #{custom_gcn_layer.3} parent=0 // pred_check_branch
    %13 = sbr.rel (0) target = $region13
  $region12: #{custom_gcn_layer.3} parent=0 // pred_region
    _
  $region13: #{custom_gcn_layer.3} parent=0 // pred_fallthru
    _
  %v14 = vld [vmem:[%s0] sm:$0xff]
  %v15 = vld [vmem:[%s1] sm:$0x1]
  %v17 = vlaneseq
  %v18 = vshrl.u32 %v17, 7
  %v19 = vsub.s32 0, %v18
  %v20 = vrot.slane %v15, %v19
  %v22 = vmul.f32 %v14, %v20
  %v23 = vld [vmem:[%s2] sm:$0x1]
  %v25 = vlaneseq
  %v26 = vshrl.u32 %v25, 7
  %v27 = vsub.s32 0, %v26
  %v28 = vrot.slane %v23, %v27
  %v30 = vadd.f32 %v22, %v28
  %v31 = vmax.f32 %v30, 0.0
  %32 = vst [vmem:[%s3] sm:$0xff] %v31
  // Predicated region
  $region14: #{custom_gcn_layer.3} parent=0 // pred_check
    _
  $region15: #{custom_gcn_layer.3} parent=0 // pred_check_branch
    %34 = sbr.rel (0) target = $region17
  $region16: #{custom_gcn_layer.3} parent=0 // pred_region
    _
  $region17: #{custom_gcn_layer.3} parent=0 // pred_fallthru
    _
  // Predicated region
  $region18: #{custom_gcn_layer.3} parent=0 // pred_check
    _
  $region19: #{custom_gcn_layer.3} parent=0 // pred_check_branch
    %36 = sbr.rel (0) target = $region21
  $region20: #{custom_gcn_layer.3} parent=0 // pred_region
    _
  $region21: #{custom_gcn_layer.3} parent=0 // pred_fallthru
    _

// kernel: custom_gcn_layer.2
$region0: #{custom_gcn_layer.2}
  #allocation0 [shape = 'u32[]', space=smem, size = 0x4, offset = 0x4, fixed_abs, tag = 'smem constant byte address 0x4 - core index']
  #allocation1 [shape = 'u32[144,128]{1,0:T(1,128)}', space=vmem, size = 0x12000, scoped, tag = 'internal scratch']
  %s0 = inlined_call_operand.hbm [shape: f32[8,128], index: 0, kind: input, shape index: {}]
  %s1 = inlined_call_operand.vmem [shape: bf16[128,128], index: 1, kind: input, shape index: {}]
  %s2 = inlined_call_operand.vmem [shape: f32[8,128], index: 2, kind: output, shape index: {0}]
  %s3 = inlined_call_operand.vmem [shape: f32[8,128], index: 3, kind: output, shape index: {1}]
  %s4 = inlined_call_operand.vmem [shape: f32[8,128], index: 4, kind: output, shape index: {2}]
  %5 = xla_tuple %s2, %s3, %s4
  %s6 = sld [smem:[#allocation0]]
  $region46: #{custom_gcn_layer.2} parent=0
    _
  %s8 = ssub.s32 1, %s6
  %s9 = scalar_select 0, %s8, %s6
  $region1: #{custom_gcn_layer.2} parent=0
    #allocation2 [shape = 'u8[4096]{0}', space=vmem, size = 0x1000, scoped, tag = 'input window, operand 0, single buffered']
    #allocation3 [shape = 's32[1]{0}', space=sflag, size = 0x4, scoped, tag = 'scoped memory for custom_gcn_layer.2']
    %10 = vsyncpa [#allocation3], 0
    // Predicated region
    $region2: #{custom_gcn_layer.2} parent=1 // pred_check
      _
    $region3: #{custom_gcn_layer.2} parent=1 // pred_check_branch
      %12 = sbr.rel (0) target = $region5
    $region4: #{custom_gcn_layer.2} parent=1 // pred_region
      %s14 = ssub.s32 128, 128
      %15 = vsyncadd [#allocation3], %s14
      %s17 = sshll.u32 [#allocation2], 4
      %s18 = int_to_ptr.vmem [resolvable:$true] %s17
      %20 = dma.hbm_to_vmem [thread:$0]  %s0, 128, %s18, [#allocation3]
    $region5: #{custom_gcn_layer.2} parent=1 // pred_fallthru
      _
    // Predicated region
    $region6: #{custom_gcn_layer.2} parent=1 // pred_check
      _
    $region7: #{custom_gcn_layer.2} parent=1 // pred_check_branch
      %22 = sbr.rel (0) target = $region9
    $region8: #{custom_gcn_layer.2} parent=1 // pred_region
      _
    $region9: #{custom_gcn_layer.2} parent=1 // pred_fallthru
      _
    // Predicated region
    $region10: #{custom_gcn_layer.2} parent=1 // pred_check
      _
    $region11: #{custom_gcn_layer.2} parent=1 // pred_check_branch
      %24 = sbr.rel (0) target = $region13
    $region12: #{custom_gcn_layer.2} parent=1 // pred_region
      %25 = dma.done [#allocation3], 128
    $region13: #{custom_gcn_layer.2} parent=1 // pred_fallthru
      _
    %p27 = scmp.eq.s32.totalorder 0, 0
    // Predicated region
    $region14: #{custom_gcn_layer.2} parent=1 // pred_check
      %p28 = pneg %p27
    $region15: #{custom_gcn_layer.2} parent=1 // pred_check_branch
      %30 = sbr.rel (%p28) target = $region17
    $region16: #{custom_gcn_layer.2} parent=1 // pred_region
      %31 = vst [vmem:[%s2] sm:$0xff] 0.0
    $region17: #{custom_gcn_layer.2} parent=1 // pred_fallthru
      _
    %v32 = vld [vmem:[#allocation2] sm:$0xff]
    %v33 = vpack.c.bf16 %v32, %v32
    %s34 = smul.u32 0, 128
    %s35 = sshra.s32 %s34, 3
    %s36 = sand.u32 %s34, 7
    %s37 = smul.addr %s35, 4
    %s38 = scalar_lea.vmem %s1, %s37
    %v39 = vld [vmem:[%s38] sm:$0xf]
    %v40 = vld [vmem:[%s38 + $0x4] sm:$0xf]
    %v41 = vld [vmem:[%s38 + $0x8] sm:$0xf]
    %v42 = vld [vmem:[%s38 + $0xc] sm:$0xf]
    %v43 = vld [vmem:[%s38 + $0x10] sm:$0xf]
    %v44 = vld [vmem:[%s38 + $0x14] sm:$0xf]
    %v45 = vld [vmem:[%s38 + $0x18] sm:$0xf]
    %v46 = vld [vmem:[%s38 + $0x1c] sm:$0xf]
    %v47 = vld [vmem:[%s38 + $0x20] sm:$0xf]
    %v48 = vld [vmem:[%s38 + $0x24] sm:$0xf]
    %v49 = vld [vmem:[%s38 + $0x28] sm:$0xf]
    %v50 = vld [vmem:[%s38 + $0x2c] sm:$0xf]
    %v51 = vld [vmem:[%s38 + $0x30] sm:$0xf]
    %v52 = vld [vmem:[%s38 + $0x34] sm:$0xf]
    %v53 = vld [vmem:[%s38 + $0x38] sm:$0xf]
    %v54 = vld [vmem:[%s38 + $0x3c] sm:$0xf]
    %v55 = vld [vmem:[%s2] sm:$0xff]
    %v72 = vunpack.c.l.b16 %v39
    %v73 = vunpack.c.l.b16 %v40
    %v74 = vunpack.c.l.b16 %v41
    %v75 = vunpack.c.l.b16 %v42
    %v76 = vunpack.c.l.b16 %v43
    %v77 = vunpack.c.l.b16 %v44
    %v78 = vunpack.c.l.b16 %v45
    %v79 = vunpack.c.l.b16 %v46
    %v80 = vunpack.c.l.b16 %v47
    %v81 = vunpack.c.l.b16 %v48
    %v82 = vunpack.c.l.b16 %v49
    %v83 = vunpack.c.l.b16 %v50
    %v84 = vunpack.c.l.b16 %v51
    %v85 = vunpack.c.l.b16 %v52
    %v86 = vunpack.c.l.b16 %v53
    %v87 = vunpack.c.l.b16 %v54
    %v88 = vpack.c.b16 %v73, %v72
    %v89 = vpack.c.b16 %v75, %v74
    %v90 = vpack.c.b16 %v77, %v76
    %v91 = vpack.c.b16 %v79, %v78
    %v92 = vpack.c.b16 %v81, %v80
    %v93 = vpack.c.b16 %v83, %v82
    %v94 = vpack.c.b16 %v85, %v84
    %v95 = vpack.c.b16 %v87, %v86
    %104 = vmatprep.subr.bf16.mxu0 0
    %105 = vmatpush1.bf16.msra.mxu0 %v88
    %106 = vmatprep.subr.bf16.mxu0 0
    %107 = vmatpush1.bf16.msra.mxu0 %v89
    %108 = vmatprep.subr.bf16.mxu0 0
    %109 = vmatpush1.bf16.msra.mxu0 %v90
    %110 = vmatprep.subr.bf16.mxu0 0
    %111 = vmatpush1.bf16.msra.mxu0 %v91
    %112 = vmatprep.subr.bf16.mxu0 0
    %113 = vmatpush1.bf16.msra.mxu0 %v92
    %114 = vmatprep.subr.bf16.mxu0 0
    %115 = vmatpush1.bf16.msra.mxu0 %v93
    %116 = vmatprep.subr.bf16.mxu0 0
    %117 = vmatpush1.bf16.msra.mxu0 %v94
    %118 = vmatprep.subr.bf16.mxu0 0
    %119 = vmatpush1.bf16.msra.mxu0 %v95
    %120 = vmatprep.subr.bf16.mxu0 0
    %121 = vmatpush1.bf16.msra.mxu0 0
    %122 = vmatprep.subr.bf16.mxu0 0
    %123 = vmatpush1.bf16.msra.mxu0 0
    %124 = vmatprep.subr.bf16.mxu0 0
    %125 = vmatpush1.bf16.msra.mxu0 0
    %126 = vmatprep.subr.bf16.mxu0 0
    %127 = vmatpush1.bf16.msra.mxu0 0
    %128 = vmatprep.subr.bf16.mxu0 0
    %129 = vmatpush1.bf16.msra.mxu0 0
    %130 = vmatprep.subr.bf16.mxu0 0
    %131 = vmatpush1.bf16.msra.mxu0 0
    %132 = vmatprep.subr.bf16.mxu0 0
    %133 = vmatpush1.bf16.msra.mxu0 0
    %134 = vmatprep.subr.bf16.mxu0 0
    %135 = vmatpush1.bf16.msra.mxu0 0
    %136 = vmatprep.mubr.bf16.mxu0 0
    %137 = vmatmul.mubr.bf16.gmra.mrb[0].mxu0 %v33
    %v138 = vpop.f32.mrb[0].mxu0
    %v139 = vadd.f32 0.0, %v138
    %v140 = vpop.f32.mrb[0].mxu0
    %v141 = vpop.f32.mrb[0].mxu0
    %v142 = vpop.f32.mrb[0].mxu0
    %143 = vdwg.mxu0
    %v144 = vadd.f32 %v55, %v139
    %145 = vst [vmem:[%s2] sm:$0xff] %v144
    // Predicated region
    $region18: #{custom_gcn_layer.2} parent=1 // pred_check
      %p146 = pneg %p27
    $region19: #{custom_gcn_layer.2} parent=1 // pred_check_branch
      %148 = sbr.rel (%p146) target = $region21
    $region20: #{custom_gcn_layer.2} parent=1 // pred_region
      %v149 = vld [vmem:[%s2] sm:$0xff]
      %v150 = vadd.f32 %v149, 0.0
      %v151 = vmul.f32 %v149, %v149
      %v152 = vadd.f32 %v151, 0.0
      %153 = vst [vmem:[%s3] sm:$0xff] %v150
      %154 = vst [vmem:[%s4] sm:$0xff] %v152
    $region21: #{custom_gcn_layer.2} parent=1 // pred_fallthru
      _
    // Predicated region
    $region22: #{custom_gcn_layer.2} parent=1 // pred_check
      _
    $region23: #{custom_gcn_layer.2} parent=1 // pred_check_branch
      %156 = sbr.rel (0) target = $region25
    $region24: #{custom_gcn_layer.2} parent=1 // pred_region
      _
    $region25: #{custom_gcn_layer.2} parent=1 // pred_fallthru
      _
    // Predicated region
    $region26: #{custom_gcn_layer.2} parent=1 // pred_check
      _
    $region27: #{custom_gcn_layer.2} parent=1 // pred_check_branch
      %158 = sbr.rel (0) target = $region29
    $region28: #{custom_gcn_layer.2} parent=1 // pred_region
      _
    $region29: #{custom_gcn_layer.2} parent=1 // pred_fallthru
      _
    // Predicated region
    $region30: #{custom_gcn_layer.2} parent=1 // pred_check
      _
    $region31: #{custom_gcn_layer.2} parent=1 // pred_check_branch
      %160 = sbr.rel (0) target = $region33
    $region32: #{custom_gcn_layer.2} parent=1 // pred_region
      _
    $region33: #{custom_gcn_layer.2} parent=1 // pred_fallthru
      _
    // Predicated region
    $region34: #{custom_gcn_layer.2} parent=1 // pred_check
      _
    $region35: #{custom_gcn_layer.2} parent=1 // pred_check_branch
      %162 = sbr.rel (0) target = $region37
    $region36: #{custom_gcn_layer.2} parent=1 // pred_region
      _
    $region37: #{custom_gcn_layer.2} parent=1 // pred_fallthru
      _
    // Predicated region
    $region38: #{custom_gcn_layer.2} parent=1 // pred_check
      _
    $region39: #{custom_gcn_layer.2} parent=1 // pred_check_branch
      %164 = sbr.rel (0) target = $region41
    $region40: #{custom_gcn_layer.2} parent=1 // pred_region
      _
    $region41: #{custom_gcn_layer.2} parent=1 // pred_fallthru
      _
    // Predicated region
    $region42: #{custom_gcn_layer.2} parent=1 // pred_check
      _
    $region43: #{custom_gcn_layer.2} parent=1 // pred_check_branch
      %166 = sbr.rel (0) target = $region45
    $region44: #{custom_gcn_layer.2} parent=1 // pred_region
      _
    $region45: #{custom_gcn_layer.2} parent=1 // pred_fallthru
      _
    %167 = vsyncpa [#allocation3], 1

</llo_original>
